<compile_context>
chip_gen: v5e
topology: v5e:2x2
jax: 0.10.0
libtpu: 0.0.40
codegen_flags: <defaults>
</compile_context>

<pallas_src>
import jax
import jax.numpy as jnp
from jax.experimental import pallas as pl
from jax.experimental.pallas import tpu as pltpu

_LANE = 128


def _round_up(x, m):
    return ((x + m - 1) // m) * m


def _cdiv(a, b):
    return -(-a // b)


def _actor_kernel(max_action):
    def kernel(s_ref, w1_ref, b1_ref, w2_ref, b2_ref, w3_ref, b3_ref, o_ref):
        # l1 + ReLU  (bn1 is nn.Identity). state already bf16; f32 accumulate.
        a = jnp.dot(s_ref[...], w1_ref[...],
                    preferred_element_type=jnp.float32) + b1_ref[...]
        a = jnp.maximum(a, 0.0)

        # l2 + ReLU  (bn2 is nn.Identity)
        a = jnp.dot(a.astype(jnp.bfloat16), w2_ref[...],
                    preferred_element_type=jnp.float32) + b2_ref[...]
        a = jnp.maximum(a, 0.0)

        # GradientSurgery.forward: scale*a + (1-scale)*stop_grad(a) == a
        # (forward value is identity; only gradients differ)

        # l3 + tanh, scaled by max_action; output lanes padded to 128, bf16 store
        out = jnp.dot(a.astype(jnp.bfloat16), w3_ref[...],
                      preferred_element_type=jnp.float32) + b3_ref[...]
        o_ref[...] = (max_action * jnp.tanh(out)).astype(o_ref.dtype)
    return kernel


def actor_forward(state, params, max_action, *, tm=1024):
    """state: [B, state_dim] float (cast to bf16 for the MXU).
       params: as produced by init_actor_params (bf16 weights in [in, out]
       layout, f32 biases [1, out]; W3/b3 already padded to a 128-lane slab;
       'action_dim' records the true output width). Returns bf16 [B, action_dim]."""
    B, state_dim = state.shape
    hidden = params["W1"].shape[1]
    n_pad = params["W3"].shape[1]
    action_dim = params["action_dim"]

    # --- even-split batch tiling; >=2 tiles when B>=16 for the v7x 2-TC split ---
    n_tiles = _cdiv(B, tm)
    if n_tiles == 1 and B >= 16:
        n_tiles = 2
    tm_eff = _round_up(_cdiv(B, n_tiles), 8)
    B_pad = tm_eff * n_tiles

    state = state.astype(jnp.bfloat16)
    if B_pad != B:
        state = jnp.pad(state, ((0, B_pad - B), (0, 0)))

    grid = (n_tiles,)
    state_spec = pl.BlockSpec((tm_eff, state_dim), lambda i: (i, 0))
    out_spec = pl.BlockSpec((tm_eff, n_pad), lambda i: (i, 0))
    # weights/biases: full block, constant index_map -> VMEM-resident across
    # all grid iterations (single copy, no re-DMA per step).
    const = lambda arr: pl.BlockSpec(arr.shape, lambda i: (0,) * arr.ndim)

    weight_args = (params["W1"], params["b1"], params["W2"], params["b2"],
                   params["W3"], params["b3"])

    flops = 2 * B_pad * (state_dim * hidden + hidden * hidden + hidden * n_pad)
    bytes_accessed = (
        state.size * state.dtype.itemsize
        + sum(int(p.size) * p.dtype.itemsize for p in weight_args)
        + B_pad * n_pad * 2)  # bf16 output

    out = pl.pallas_call(
        _actor_kernel(float(max_action)),
        out_shape=jax.ShapeDtypeStruct((B_pad, n_pad), jnp.bfloat16),
        grid=grid,
        in_specs=[state_spec] + [const(a) for a in weight_args],
        out_specs=out_spec,
        compiler_params=pltpu.CompilerParams(
            dimension_semantics=("parallel",)),
        cost_estimate=pl.CostEstimate(
            flops=flops,
            transcendentals=B_pad * n_pad,
            bytes_accessed=bytes_accessed),
    )(state, *weight_args)

    return out[:B, :action_dim]


def init_actor_params(key, state_dim, action_dim, hidden=256):
    """One-time param prep (hoisted out of the per-call path):
       PyTorch-Linear-like uniform fan-in init; weights stored bf16 in
       [in, out] layout, biases f32 [1, out]; layer-3 weight/bias zero-padded
       to a 128-lane output slab so the kernel's final store is an unmasked
       full-lane vst."""
    ks = jax.random.split(key, 6)

    def linear(kw, kb, fan_in, fan_out):
        bound = 1.0 / jnp.sqrt(fan_in)
        W = jax.random.uniform(kw, (fan_in, fan_out), jnp.float32, -bound, bound)
        b = jax.random.uniform(kb, (1, fan_out), jnp.float32, -bound, bound)
        return W, b

    W1, b1 = linear(ks[0], ks[1], state_dim, hidden)
    W2, b2 = linear(ks[2], ks[3], hidden, hidden)
    W3, b3 = linear(ks[4], ks[5], hidden, action_dim)

    n_pad = _round_up(max(action_dim, _LANE), _LANE)
    W3p = jnp.zeros((hidden, n_pad), jnp.float32).at[:, :action_dim].set(W3)
    b3p = jnp.zeros((1, n_pad), jnp.float32).at[:, :action_dim].set(b3)

    return {"W1": W1.astype(jnp.bfloat16), "b1": b1,
            "W2": W2.astype(jnp.bfloat16), "b2": b2,
            "W3": W3p.astype(jnp.bfloat16), "b3": b3p,
            "action_dim": action_dim}


def actor_ref(state, params, max_action):
    """Pure-JAX reference mirroring the kernel's bf16-in / f32-accumulate math."""
    def mm(x, w):
        return jax.lax.dot(x.astype(jnp.bfloat16), w,
                           preferred_element_type=jnp.float32)
    a = jnp.maximum(mm(state, params["W1"]) + params["b1"], 0.0)
    a = jnp.maximum(mm(a, params["W2"]) + params["b2"], 0.0)
    # GradientSurgery: identity in the forward value
    out = max_action * jnp.tanh(mm(a, params["W3"]) + params["b3"])
    return out[:, :params["action_dim"]]


if __name__ == "__main__":
    key = jax.random.PRNGKey(0)
    k_state, k_params, k_state2 = jax.random.split(key, 3)

    batch = 8
    state_dim = 16
    action_dim = 8
    max_action = 2.0

    params = init_actor_params(k_params, state_dim, action_dim)

    # small batch (single tile path)
    state = jax.random.normal(k_state, (batch, state_dim), jnp.float32)
    out = jax.block_until_ready(actor_forward(state, params, max_action))
    ref = actor_ref(state, params, max_action)
    assert out.shape == (batch, action_dim)
    assert out.dtype == jnp.bfloat16
    err = float(jnp.max(jnp.abs(out.astype(jnp.float32) - ref)))
    assert err < 2e-2, err

    # medium batch (>=2 tiles, even-split + row padding path)
    state2 = jax.random.normal(k_state2, (40, state_dim), jnp.float32)
    out2 = jax.block_until_ready(actor_forward(state2, params, max_action))
    ref2 = actor_ref(state2, params, max_action)
    assert out2.shape == (40, action_dim)
    err2 = float(jnp.max(jnp.abs(out2.astype(jnp.float32) - ref2)))
    assert err2 < 2e-2, err2

    print("KERNEL_OK")
</pallas_src>

<mosaic_0001>
module attributes {stable_mosaic.version = 11 : i64} {
  func.func @kernel(%arg0: i32, %arg1: memref<8x16xbf16, #tpu.memory_space<vmem>>, %arg2: memref<16x256xbf16, #tpu.memory_space<vmem>>, %arg3: memref<1x256xf32, #tpu.memory_space<vmem>>, %arg4: memref<256x256xbf16, #tpu.memory_space<vmem>>, %arg5: memref<1x256xf32, #tpu.memory_space<vmem>>, %arg6: memref<256x128xbf16, #tpu.memory_space<vmem>>, %arg7: memref<1x128xf32, #tpu.memory_space<vmem>>, %arg8: memref<8x128xbf16, #tpu.memory_space<vmem>>) attributes {dimension_semantics = [#tpu.dimension_semantics<parallel>], iteration_bounds = array<i64: 1>, scalar_prefetch = 0 : i64, scratch_operands = 0 : i64, tpu.core_type = #tpu.core_type<tc>, window_params = [{transform_indices = @transform_0, window_bounds = array<i64: 8, 16>}, {pipeline_mode = #tpu.pipeline_mode<synchronous>, transform_indices = @transform_1, window_bounds = array<i64: 16, 256>}, {pipeline_mode = #tpu.pipeline_mode<synchronous>, transform_indices = @transform_2, window_bounds = array<i64: 1, 256>}, {pipeline_mode = #tpu.pipeline_mode<synchronous>, transform_indices = @transform_3, window_bounds = array<i64: 256, 256>}, {pipeline_mode = #tpu.pipeline_mode<synchronous>, transform_indices = @transform_4, window_bounds = array<i64: 1, 256>}, {pipeline_mode = #tpu.pipeline_mode<synchronous>, transform_indices = @transform_5, window_bounds = array<i64: 256, 128>}, {pipeline_mode = #tpu.pipeline_mode<synchronous>, transform_indices = @transform_6, window_bounds = array<i64: 1, 128>}, {transform_indices = @transform_7, window_bounds = array<i64: 8, 128>}]} {
    %c0 = arith.constant 0 : index
    %c0_0 = arith.constant 0 : index
    %0 = vector.load %arg1[%c0, %c0_0] : memref<8x16xbf16, #tpu.memory_space<vmem>>, vector<8x16xbf16>
    %c0_1 = arith.constant 0 : index
    %c0_2 = arith.constant 0 : index
    %1 = vector.load %arg2[%c0_1, %c0_2] : memref<16x256xbf16, #tpu.memory_space<vmem>>, vector<16x256xbf16>
    %cst = arith.constant dense<0.000000e+00> : vector<8x256xf32>
    %2 = tpu.matmul %0, %1, %cst {dimension_numbers = #tpu.dot_dimension_numbers<[1], [0], [0], [1], [0, 0, 1, 1], [], []>} : vector<8x16xbf16>, vector<16x256xbf16>, vector<8x256xf32> -> vector<8x256xf32>
    %c0_3 = arith.constant 0 : index
    %c0_4 = arith.constant 0 : index
    %3 = vector.load %arg3[%c0_3, %c0_4] : memref<1x256xf32, #tpu.memory_space<vmem>>, vector<1x256xf32>
    %4 = vector.broadcast %3 : vector<1x256xf32> to vector<8x256xf32>
    %5 = arith.addf %2, %4 : vector<8x256xf32>
    %cst_5 = arith.constant 0.000000e+00 : f32
    %6 = vector.broadcast %cst_5 : f32 to vector<8x256xf32>
    %7 = arith.maximumf %5, %6 : vector<8x256xf32>
    %8 = arith.truncf %7 : vector<8x256xf32> to vector<8x256xbf16>
    %c0_6 = arith.constant 0 : index
    %c0_7 = arith.constant 0 : index
    %9 = vector.load %arg4[%c0_6, %c0_7] : memref<256x256xbf16, #tpu.memory_space<vmem>>, vector<256x256xbf16>
    %cst_8 = arith.constant dense<0.000000e+00> : vector<8x256xf32>
    %10 = tpu.matmul %8, %9, %cst_8 {dimension_numbers = #tpu.dot_dimension_numbers<[1], [0], [0], [1], [0, 0, 1, 1], [], []>} : vector<8x256xbf16>, vector<256x256xbf16>, vector<8x256xf32> -> vector<8x256xf32>
    %c0_9 = arith.constant 0 : index
    %c0_10 = arith.constant 0 : index
    %11 = vector.load %arg5[%c0_9, %c0_10] : memref<1x256xf32, #tpu.memory_space<vmem>>, vector<1x256xf32>
    %12 = vector.broadcast %11 : vector<1x256xf32> to vector<8x256xf32>
    %13 = arith.addf %10, %12 : vector<8x256xf32>
    %cst_11 = arith.constant 0.000000e+00 : f32
    %14 = vector.broadcast %cst_11 : f32 to vector<8x256xf32>
    %15 = arith.maximumf %13, %14 : vector<8x256xf32>
    %16 = arith.truncf %15 : vector<8x256xf32> to vector<8x256xbf16>
    %c0_12 = arith.constant 0 : index
    %c0_13 = arith.constant 0 : index
    %17 = vector.load %arg6[%c0_12, %c0_13] : memref<256x128xbf16, #tpu.memory_space<vmem>>, vector<256x128xbf16>
    %cst_14 = arith.constant dense<0.000000e+00> : vector<8x128xf32>
    %18 = tpu.matmul %16, %17, %cst_14 {dimension_numbers = #tpu.dot_dimension_numbers<[1], [0], [0], [1], [0, 0, 1, 1], [], []>} : vector<8x256xbf16>, vector<256x128xbf16>, vector<8x128xf32> -> vector<8x128xf32>
    %c0_15 = arith.constant 0 : index
    %c0_16 = arith.constant 0 : index
    %19 = vector.load %arg7[%c0_15, %c0_16] : memref<1x128xf32, #tpu.memory_space<vmem>>, vector<1x128xf32>
    %20 = vector.broadcast %19 : vector<1x128xf32> to vector<8x128xf32>
    %21 = arith.addf %18, %20 : vector<8x128xf32>
    %22 = math.tanh %21 : vector<8x128xf32>
    %cst_17 = arith.constant 2.000000e+00 : f32
    %23 = vector.broadcast %cst_17 : f32 to vector<8x128xf32>
    %24 = arith.mulf %23, %22 : vector<8x128xf32>
    %25 = arith.truncf %24 : vector<8x128xf32> to vector<8x128xbf16>
    %c0_18 = arith.constant 0 : index
    %c0_19 = arith.constant 0 : index
    %26 = vector.load %arg8[%c0_18, %c0_19] : memref<8x128xbf16, #tpu.memory_space<vmem>>, vector<8x128xbf16>
    tpu.vector_store %arg8[%c0_18, %c0_19], %25 {strides = array<i32>} : memref<8x128xbf16, #tpu.memory_space<vmem>>, vector<8x128xbf16>,
    return
  }
  func.func @transform_0(%arg0: i32) -> (i32, i32) {
    %c0_i32 = arith.constant 0 : i32
    %c0_i32_0 = arith.constant 0 : i32
    return %arg0, %c0_i32 : i32, i32
  }
  func.func @transform_1(%arg0: i32) -> (i32, i32) {
    %c0_i32 = arith.constant 0 : i32
    %c0_i32_0 = arith.constant 0 : i32
    %c0_i32_1 = arith.constant 0 : i32
    return %c0_i32, %c0_i32_0 : i32, i32
  }
  func.func @transform_2(%arg0: i32) -> (i32, i32) {
    %c0_i32 = arith.constant 0 : i32
    %c0_i32_0 = arith.constant 0 : i32
    %c0_i32_1 = arith.constant 0 : i32
    return %c0_i32, %c0_i32_0 : i32, i32
  }
  func.func @transform_3(%arg0: i32) -> (i32, i32) {
    %c0_i32 = arith.constant 0 : i32
    %c0_i32_0 = arith.constant 0 : i32
    %c0_i32_1 = arith.constant 0 : i32
    return %c0_i32, %c0_i32_0 : i32, i32
  }
  func.func @transform_4(%arg0: i32) -> (i32, i32) {
    %c0_i32 = arith.constant 0 : i32
    %c0_i32_0 = arith.constant 0 : i32
    %c0_i32_1 = arith.constant 0 : i32
    return %c0_i32, %c0_i32_0 : i32, i32
  }
  func.func @transform_5(%arg0: i32) -> (i32, i32) {
    %c0_i32 = arith.constant 0 : i32
    %c0_i32_0 = arith.constant 0 : i32
    %c0_i32_1 = arith.constant 0 : i32
    return %c0_i32, %c0_i32_0 : i32, i32
  }
  func.func @transform_6(%arg0: i32) -> (i32, i32) {
    %c0_i32 = arith.constant 0 : i32
    %c0_i32_0 = arith.constant 0 : i32
    %c0_i32_1 = arith.constant 0 : i32
    return %c0_i32, %c0_i32_0 : i32, i32
  }
  func.func @transform_7(%arg0: i32) -> (i32, i32) {
    %c0_i32 = arith.constant 0 : i32
    %c0_i32_0 = arith.constant 0 : i32
    return %arg0, %c0_i32 : i32, i32
  }
}

</mosaic_0001>

<llo_original>
// kernel: tpu_custom_call.1
$region0: #{tpu_custom_call.1}
  #allocation0 [shape = 'u32[]', space=smem, size = 0x4, offset = 0x4, fixed_abs, tag = 'smem constant byte address 0x4 - core index']
  #allocation1 [shape = 'u32[72,128]{1,0:T(1,128)}', space=vmem, size = 0x9000, scoped, tag = 'internal scratch']
  %s0 = inlined_call_operand.hbm [shape: bf16[8,16], index: 0, kind: input, shape index: {}]
  %s1 = inlined_call_operand.hbm [shape: bf16[16,256], index: 1, kind: input, shape index: {}]
  %s2 = inlined_call_operand.hbm [shape: f32[1,256], index: 2, kind: input, shape index: {}]
  %s3 = inlined_call_operand.hbm [shape: bf16[256,256], index: 3, kind: input, shape index: {}]
  %s4 = inlined_call_operand.vmem [shape: f32[1,256], index: 4, kind: input, shape index: {}]
  %s5 = inlined_call_operand.hbm [shape: bf16[256,128], index: 5, kind: input, shape index: {}]
  %s6 = inlined_call_operand.vmem [shape: f32[1,128], index: 6, kind: input, shape index: {}]
  %s7 = inlined_call_operand.hbm [shape: bf16[8,128], index: 7, kind: output, shape index: {}]
  %s8 = sld [smem:[#allocation0]]
  $region58: #{tpu_custom_call.1} parent=0
    _
  %s10 = ssub.s32 1, %s8
  %s11 = scalar_select 0, %s10, %s8
  $region1: #{tpu_custom_call.1} parent=0
    #allocation2 [shape = 'u8[2048]{0}', space=vmem, size = 0x800, scoped, tag = 'input window, operand 0, single buffered']
    #allocation3 [shape = 's32[1]{0}', space=sflag, size = 0x4, scoped, tag = 'scoped memory for tpu_custom_call.1']
    #allocation4 [shape = 's32[1]{0}', space=sflag, size = 0x4, scoped, tag = 'scoped memory for tpu_custom_call.1']
    #allocation5 [shape = 'u8[8192]{0}', space=vmem, size = 0x2000, scoped, tag = 'input window, operand 1, single buffered']
    #allocation6 [shape = 's32[1]{0}', space=sflag, size = 0x4, scoped, tag = 'scoped memory for tpu_custom_call.1']
    #allocation7 [shape = 'u8[1024]{0}', space=vmem, size = 0x400, scoped, tag = 'input window, operand 2, single buffered']
    #allocation8 [shape = 'u8[131072]{0}', space=vmem, size = 0x20000, scoped, tag = 'input window, operand 3, single buffered']
    #allocation9 [shape = 's32[1]{0}', space=sflag, size = 0x4, scoped, tag = 'scoped memory for tpu_custom_call.1']
    #allocation10 [shape = 'u8[65536]{0}', space=vmem, size = 0x10000, scoped, tag = 'input window, operand 5, single buffered']
    #allocation11 [shape = 'u8[2048]{0}', space=vmem, size = 0x800, scoped, tag = 'output window, operand 0, single buffered']
    %12 = vsyncpa [#allocation3], 0
    %13 = vsyncpa [#allocation6], 0
    %14 = vsyncpa [#allocation9], 0
    %15 = vsyncpa [#allocation4], 0
    // Predicated region
    $region2: #{tpu_custom_call.1} parent=1 // pred_check
      _
    $region3: #{tpu_custom_call.1} parent=1 // pred_check_branch
      %17 = sbr.rel (0) target = $region5
    $region4: #{tpu_custom_call.1} parent=1 // pred_region
      %19 = vsyncadd [#allocation3], 0
      %s21 = sshll.u32 %s0, 4
      %s22 = int_to_ptr.hbm [resolvable:$true] %s21
      %s23 = sshll.u32 [#allocation2], 4
      %s24 = int_to_ptr.vmem [resolvable:$true] %s23
      %26 = dma.hbm_to_vmem [thread:$0]  %s22, 64, %s24, [#allocation3]
    $region5: #{tpu_custom_call.1} parent=1 // pred_fallthru
      _
    // Predicated region
    $region6: #{tpu_custom_call.1} parent=1 // pred_check
      _
    $region7: #{tpu_custom_call.1} parent=1 // pred_check_branch
      %28 = sbr.rel (0) target = $region9
    $region8: #{tpu_custom_call.1} parent=1 // pred_region
      %30 = vsyncadd [#allocation6], 0
      %s31 = sshll.u32 %s1, 4
      %s32 = int_to_ptr.hbm [resolvable:$true] %s31
      %s33 = sshll.u32 [#allocation5], 4
      %s34 = int_to_ptr.vmem [resolvable:$true] %s33
      %39 = dma.hbm_to_vmem [thread:$0]  %s32, 256, %s34, [#allocation6], 128, 128, 8
    $region9: #{tpu_custom_call.1} parent=1 // pred_fallthru
      _
    // Predicated region
    $region10: #{tpu_custom_call.1} parent=1 // pred_check
      _
    $region11: #{tpu_custom_call.1} parent=1 // pred_check_branch
      %41 = sbr.rel (0) target = $region13
    $region12: #{tpu_custom_call.1} parent=1 // pred_region
      %43 = vsyncadd [#allocation6], 0
      %s45 = sshll.u32 %s2, 4
      %s46 = int_to_ptr.hbm [resolvable:$true] %s45
      %s47 = sshll.u32 [#allocation7], 4
      %s48 = int_to_ptr.vmem [resolvable:$true] %s47
      %50 = dma.hbm_to_vmem [thread:$0]  %s46, 32, %s48, [#allocation6]
    $region13: #{tpu_custom_call.1} parent=1 // pred_fallthru
      _
    // Predicated region
    $region14: #{tpu_custom_call.1} parent=1 // pred_check
      _
    $region15: #{tpu_custom_call.1} parent=1 // pred_check_branch
      %52 = sbr.rel (0) target = $region17
    $region16: #{tpu_custom_call.1} parent=1 // pred_region
      %54 = vsyncadd [#allocation9], 0
      %s55 = sshll.u32 %s3, 4
      %s56 = int_to_ptr.hbm [resolvable:$true] %s55
      %s57 = sshll.u32 [#allocation8], 4
      %s58 = int_to_ptr.vmem [resolvable:$true] %s57
      %63 = dma.hbm_to_vmem [thread:$0]  %s56, 4096, %s58, [#allocation9], 128, 128, 8
    $region17: #{tpu_custom_call.1} parent=1 // pred_fallthru
      _
    // Predicated region
    $region18: #{tpu_custom_call.1} parent=1 // pred_check
      _
    $region19: #{tpu_custom_call.1} parent=1 // pred_check_branch
      %65 = sbr.rel (0) target = $region21
    $region20: #{tpu_custom_call.1} parent=1 // pred_region
      _
    $region21: #{tpu_custom_call.1} parent=1 // pred_fallthru
      _
    // Predicated region
    $region22: #{tpu_custom_call.1} parent=1 // pred_check
      _
    $region23: #{tpu_custom_call.1} parent=1 // pred_check_branch
      %67 = sbr.rel (0) target = $region25
    $region24: #{tpu_custom_call.1} parent=1 // pred_region
      %69 = vsyncadd [#allocation9], 0
      %s70 = sshll.u32 %s5, 4
      %s71 = int_to_ptr.hbm [resolvable:$true] %s70
      %s72 = sshll.u32 [#allocation10], 4
      %s73 = int_to_ptr.vmem [resolvable:$true] %s72
      %78 = dma.hbm_to_vmem [thread:$0]  %s71, 2048, %s73, [#allocation9], 64, 64, 4
    $region25: #{tpu_custom_call.1} parent=1 // pred_fallthru
      _
    // Predicated region
    $region26: #{tpu_custom_call.1} parent=1 // pred_check
      _
    $region27: #{tpu_custom_call.1} parent=1 // pred_check_branch
      %80 = sbr.rel (0) target = $region29
    $region28: #{tpu_custom_call.1} parent=1 // pred_region
      _
    $region29: #{tpu_custom_call.1} parent=1 // pred_fallthru
      _
    // Predicated region
    $region30: #{tpu_custom_call.1} parent=1 // pred_check
      _
    $region31: #{tpu_custom_call.1} parent=1 // pred_check_branch
      %82 = sbr.rel (0) target = $region33
    $region32: #{tpu_custom_call.1} parent=1 // pred_region
      %84 = dma.done [#allocation3], 64
    $region33: #{tpu_custom_call.1} parent=1 // pred_fallthru
      _
    // Predicated region
    $region34: #{tpu_custom_call.1} parent=1 // pred_check
      _
    $region35: #{tpu_custom_call.1} parent=1 // pred_check_branch
      %86 = sbr.rel (0) target = $region37
    $region36: #{tpu_custom_call.1} parent=1 // pred_region
      %88 = dma.done [#allocation6], 256
    $region37: #{tpu_custom_call.1} parent=1 // pred_fallthru
      _
    // Predicated region
    $region38: #{tpu_custom_call.1} parent=1 // pred_check
      _
    $region39: #{tpu_custom_call.1} parent=1 // pred_check_branch
      %90 = sbr.rel (0) target = $region41
    $region40: #{tpu_custom_call.1} parent=1 // pred_region
      %92 = dma.done [#allocation6], 32
    $region41: #{tpu_custom_call.1} parent=1 // pred_fallthru
      _
    // Predicated region
    $region42: #{tpu_custom_call.1} parent=1 // pred_check
      _
    $region43: #{tpu_custom_call.1} parent=1 // pred_check_branch
      %94 = sbr.rel (0) target = $region45
    $region44: #{tpu_custom_call.1} parent=1 // pred_region
      %96 = dma.done [#allocation9], 4096
    $region45: #{tpu_custom_call.1} parent=1 // pred_fallthru
      _
    // Predicated region
    $region46: #{tpu_custom_call.1} parent=1 // pred_check
      _
    $region47: #{tpu_custom_call.1} parent=1 // pred_check_branch
      %98 = sbr.rel (0) target = $region49
    $region48: #{tpu_custom_call.1} parent=1 // pred_region
      %100 = dma.done [#allocation9], 2048
    $region49: #{tpu_custom_call.1} parent=1 // pred_fallthru
      _
    %v102 = vld [vmem:[#allocation2] sm:$0xf]
    %v103 = vld [vmem:[#allocation5] sm:$0xff]
    %v104 = vld [vmem:[#allocation5 + $0x8] sm:$0xff]
    %v105 = vld [vmem:[#allocation7] sm:$0x3]
    %v107 = vperm.slane %v105, 0
    %v108 = vperm.slane %v105, 1
    %v113 = vunpack.c.l.b16 %v103
    %v114 = vunpack.c.h.b16 %v103
    %v115 = vunpack.c.l.b16 %v104
    %v116 = vunpack.c.h.b16 %v104
    %v117 = vpack.c.b16 %v115, %v113
    %v118 = vpack.c.b16 %v116, %v114
    %vm121 = vcmask 130048
    %v123 = vsel %vm121, %v102, 0
    %125 = vmatpush.bf16.msra.mxu0 0
    %126 = vmatpush.bf16.msra.mxu0 0
    %127 = vmatpush.bf16.msra.mxu0 0
    %128 = vmatpush.bf16.msra.mxu0 0
    %129 = vmatpush.bf16.msra.mxu0 0
    %130 = vmatpush.bf16.msra.mxu0 0
    %131 = vmatpush.bf16.msra.mxu0 0
    %132 = vmatpush.bf16.msra.mxu0 %v117
    %133 = vmatmul.bf16.gmra.mxu0 %v123
    %v134 = vpop.f32.mrf.mxu0
    %v135 = vadd.f32 %v107, %v134
    %v136 = vpop.f32.mrf.mxu0
    %137 = vdwg.mxu0
    %138 = vmatpush.bf16.msra.mxu0 0
    %139 = vmatpush.bf16.msra.mxu0 0
    %140 = vmatpush.bf16.msra.mxu0 0
    %141 = vmatpush.bf16.msra.mxu0 0
    %142 = vmatpush.bf16.msra.mxu0 0
    %143 = vmatpush.bf16.msra.mxu0 0
    %144 = vmatpush.bf16.msra.mxu0 0
    %145 = vmatpush.bf16.msra.mxu0 %v118
    %146 = vmatmul.bf16.gmra.mxu0 %v123
    %v147 = vpop.f32.mrf.mxu0
    %v148 = vadd.f32 %v108, %v147
    %v149 = vpop.f32.mrf.mxu0
    %150 = vdwg.mxu0
    %v151 = vmax.f32 %v135, 0.0
    %v152 = vmax.f32 %v148, 0.0
    %v153 = vpack.c.bf16 %v151, %v151
    %v154 = vpack.c.bf16 %v152, %v152
    %v155 = vld [vmem:[#allocation8] sm:$0xff]
    %v156 = vld [vmem:[#allocation8 + $0x8] sm:$0xff]
    %v157 = vld [vmem:[#allocation8 + $0x10] sm:$0xff]
    %v158 = vld [vmem:[#allocation8 + $0x18] sm:$0xff]
    %v159 = vld [vmem:[#allocation8 + $0x20] sm:$0xff]
    %v160 = vld [vmem:[#allocation8 + $0x28] sm:$0xff]
    %v161 = vld [vmem:[#allocation8 + $0x30] sm:$0xff]
    %v162 = vld [vmem:[#allocation8 + $0x38] sm:$0xff]
    %v163 = vld [vmem:[#allocation8 + $0x40] sm:$0xff]
    %v164 = vld [vmem:[#allocation8 + $0x48] sm:$0xff]
    %v165 = vld [vmem:[#allocation8 + $0x50] sm:$0xff]
    %v166 = vld [vmem:[#allocation8 + $0x58] sm:$0xff]
    %v167 = vld [vmem:[#allocation8 + $0x60] sm:$0xff]
    %v168 = vld [vmem:[#allocation8 + $0x68] sm:$0xff]
    %v169 = vld [vmem:[#allocation8 + $0x70] sm:$0xff]
    %v170 = vld [vmem:[#allocation8 + $0x78] sm:$0xff]
    %v171 = vld [vmem:[#allocation8 + $0x80] sm:$0xff]
    %v172 = vld [vmem:[#allocation8 + $0x88] sm:$0xff]
    %v173 = vld [vmem:[#allocation8 + $0x90] sm:$0xff]
    %v174 = vld [vmem:[#allocation8 + $0x98] sm:$0xff]
    %v175 = vld [vmem:[#allocation8 + $0xa0] sm:$0xff]
    %v176 = vld [vmem:[#allocation8 + $0xa8] sm:$0xff]
    %v177 = vld [vmem:[#allocation8 + $0xb0] sm:$0xff]
    %v178 = vld [vmem:[#allocation8 + $0xb8] sm:$0xff]
    %v179 = vld [vmem:[#allocation8 + $0xc0] sm:$0xff]
    %v180 = vld [vmem:[#allocation8 + $0xc8] sm:$0xff]
    %v181 = vld [vmem:[#allocation8 + $0xd0] sm:$0xff]
    %v182 = vld [vmem:[#allocation8 + $0xd8] sm:$0xff]
    %v183 = vld [vmem:[#allocation8 + $0xe0] sm:$0xff]
    %v184 = vld [vmem:[#allocation8 + $0xe8] sm:$0xff]
    %v185 = vld [vmem:[#allocation8 + $0xf0] sm:$0xff]
    %v186 = vld [vmem:[#allocation8 + $0xf8] sm:$0xff]
    %v187 = vld [vmem:[%s4] sm:$0x3]
    %v189 = vperm.slane %v187, 0
    %v190 = vperm.slane %v187, 1
    %v225 = vunpack.c.l.b16 %v155
    %v226 = vunpack.c.h.b16 %v155
    %v227 = vunpack.c.l.b16 %v156
    %v228 = vunpack.c.h.b16 %v156
    %v229 = vunpack.c.l.b16 %v157
    %v230 = vunpack.c.h.b16 %v157
    %v231 = vunpack.c.l.b16 %v158
    %v232 = vunpack.c.h.b16 %v158
    %v233 = vunpack.c.l.b16 %v159
    %v234 = vunpack.c.h.b16 %v159
    %v235 = vunpack.c.l.b16 %v160
    %v236 = vunpack.c.h.b16 %v160
    %v237 = vunpack.c.l.b16 %v161
    %v238 = vunpack.c.h.b16 %v161
    %v239 = vunpack.c.l.b16 %v162
    %v240 = vunpack.c.h.b16 %v162
    %v241 = vunpack.c.l.b16 %v163
    %v242 = vunpack.c.h.b16 %v163
    %v243 = vunpack.c.l.b16 %v164
    %v244 = vunpack.c.h.b16 %v164
    %v245 = vunpack.c.l.b16 %v165
    %v246 = vunpack.c.h.b16 %v165
    %v247 = vunpack.c.l.b16 %v166
    %v248 = vunpack.c.h.b16 %v166
    %v249 = vunpack.c.l.b16 %v167
    %v250 = vunpack.c.h.b16 %v167
    %v251 = vunpack.c.l.b16 %v168
    %v252 = vunpack.c.h.b16 %v168
    %v253 = vunpack.c.l.b16 %v169
    %v254 = vunpack.c.h.b16 %v169
    %v255 = vunpack.c.l.b16 %v170
    %v256 = vunpack.c.h.b16 %v170
    %v257 = vunpack.c.l.b16 %v171
    %v258 = vunpack.c.h.b16 %v171
    %v259 = vunpack.c.l.b16 %v172
    %v260 = vunpack.c.h.b16 %v172
    %v261 = vunpack.c.l.b16 %v173
    %v262 = vunpack.c.h.b16 %v173
    %v263 = vunpack.c.l.b16 %v174
    %v264 = vunpack.c.h.b16 %v174
    %v265 = vunpack.c.l.b16 %v175
    %v266 = vunpack.c.h.b16 %v175
    %v267 = vunpack.c.l.b16 %v176
    %v268 = vunpack.c.h.b16 %v176
    %v269 = vunpack.c.l.b16 %v177
    %v270 = vunpack.c.h.b16 %v177
    %v271 = vunpack.c.l.b16 %v178
    %v272 = vunpack.c.h.b16 %v178
    %v273 = vunpack.c.l.b16 %v179
    %v274 = vunpack.c.h.b16 %v179
    %v275 = vunpack.c.l.b16 %v180
    %v276 = vunpack.c.h.b16 %v180
    %v277 = vunpack.c.l.b16 %v181
    %v278 = vunpack.c.h.b16 %v181
    %v279 = vunpack.c.l.b16 %v182
    %v280 = vunpack.c.h.b16 %v182
    %v281 = vunpack.c.l.b16 %v183
    %v282 = vunpack.c.h.b16 %v183
    %v283 = vunpack.c.l.b16 %v184
    %v284 = vunpack.c.h.b16 %v184
    %v285 = vunpack.c.l.b16 %v185
    %v286 = vunpack.c.h.b16 %v185
    %v287 = vunpack.c.l.b16 %v186
    %v288 = vunpack.c.h.b16 %v186
    %v289 = vpack.c.b16 %v227, %v225
    %v290 = vpack.c.b16 %v228, %v226
    %v291 = vpack.c.b16 %v231, %v229
    %v292 = vpack.c.b16 %v232, %v230
    %v293 = vpack.c.b16 %v235, %v233
    %v294 = vpack.c.b16 %v236, %v234
    %v295 = vpack.c.b16 %v239, %v237
    %v296 = vpack.c.b16 %v240, %v238
    %v297 = vpack.c.b16 %v243, %v241
    %v298 = vpack.c.b16 %v244, %v242
    %v299 = vpack.c.b16 %v247, %v245
    %v300 = vpack.c.b16 %v248, %v246
    %v301 = vpack.c.b16 %v251, %v249
    %v302 = vpack.c.b16 %v252, %v250
    %v303 = vpack.c.b16 %v255, %v253
    %v304 = vpack.c.b16 %v256, %v254
    %v305 = vpack.c.b16 %v259, %v257
    %v306 = vpack.c.b16 %v260, %v258
    %v307 = vpack.c.b16 %v263, %v261
    %v308 = vpack.c.b16 %v264, %v262
    %v309 = vpack.c.b16 %v267, %v265
    %v310 = vpack.c.b16 %v268, %v266
    %v311 = vpack.c.b16 %v271, %v269
    %v312 = vpack.c.b16 %v272, %v270
    %v313 = vpack.c.b16 %v275, %v273
    %v314 = vpack.c.b16 %v276, %v274
    %v315 = vpack.c.b16 %v279, %v277
    %v316 = vpack.c.b16 %v280, %v278
    %v317 = vpack.c.b16 %v283, %v281
    %v318 = vpack.c.b16 %v284, %v282
    %v319 = vpack.c.b16 %v287, %v285
    %v320 = vpack.c.b16 %v288, %v286
    %353 = vmatpush.bf16.msra.mxu0 %v303
    %354 = vmatpush.bf16.msra.mxu0 %v301
    %355 = vmatpush.bf16.msra.mxu0 %v299
    %356 = vmatpush.bf16.msra.mxu0 %v297
    %357 = vmatpush.bf16.msra.mxu0 %v295
    %358 = vmatpush.bf16.msra.mxu0 %v293
    %359 = vmatpush.bf16.msra.mxu0 %v291
    %360 = vmatpush.bf16.msra.mxu0 %v289
    %361 = vmatmul.bf16.gmra.mxu0 %v153
    %v362 = vpop.f32.mrf.mxu0
    %v363 = vadd.f32 %v189, %v362
    %v364 = vpop.f32.mrf.mxu0
    %365 = vdwg.mxu0
    %366 = vmatpush.bf16.msra.mxu0 %v319
    %367 = vmatpush.bf16.msra.mxu0 %v317
    %368 = vmatpush.bf16.msra.mxu0 %v315
    %369 = vmatpush.bf16.msra.mxu0 %v313
    %370 = vmatpush.bf16.msra.mxu0 %v311
    %371 = vmatpush.bf16.msra.mxu0 %v309
    %372 = vmatpush.bf16.msra.mxu0 %v307
    %373 = vmatpush.bf16.msra.mxu0 %v305
    %374 = vmatmul.bf16.gmra.mxu0 %v154
    %v375 = vpop.f32.mrf.mxu0
    %v376 = vadd.f32 %v363, %v375
    %v377 = vpop.f32.mrf.mxu0
    %378 = vdwg.mxu0
    %379 = vmatpush.bf16.msra.mxu0 %v304
    %380 = vmatpush.bf16.msra.mxu0 %v302
    %381 = vmatpush.bf16.msra.mxu0 %v300
    %382 = vmatpush.bf16.msra.mxu0 %v298
    %383 = vmatpush.bf16.msra.mxu0 %v296
    %384 = vmatpush.bf16.msra.mxu0 %v294
    %385 = vmatpush.bf16.msra.mxu0 %v292
    %386 = vmatpush.bf16.msra.mxu0 %v290
    %387 = vmatmul.bf16.gmra.mxu0 %v153
    %v388 = vpop.f32.mrf.mxu0
    %v389 = vadd.f32 %v190, %v388
    %v390 = vpop.f32.mrf.mxu0
    %391 = vdwg.mxu0
    %392 = vmatpush.bf16.msra.mxu0 %v320
    %393 = vmatpush.bf16.msra.mxu0 %v318
    %394 = vmatpush.bf16.msra.mxu0 %v316
    %395 = vmatpush.bf16.msra.mxu0 %v314
    %396 = vmatpush.bf16.msra.mxu0 %v312
    %397 = vmatpush.bf16.msra.mxu0 %v310
    %398 = vmatpush.bf16.msra.mxu0 %v308
    %399 = vmatpush.bf16.msra.mxu0 %v306
    %400 = vmatmul.bf16.gmra.mxu0 %v154
    %v401 = vpop.f32.mrf.mxu0
    %v402 = vadd.f32 %v389, %v401
    %v403 = vpop.f32.mrf.mxu0
    %404 = vdwg.mxu0
    %v405 = vmax.f32 %v376, 0.0
    %v406 = vmax.f32 %v402, 0.0
    %v407 = vpack.c.bf16 %v405, %v405
    %v408 = vpack.c.bf16 %v406, %v406
    %v409 = vld [vmem:[#allocation10] sm:$0xf]
    %v410 = vld [vmem:[#allocation10 + $0x4] sm:$0xf]
    %v411 = vld [vmem:[#allocation10 + $0x8] sm:$0xf]
    %v412 = vld [vmem:[#allocation10 + $0xc] sm:$0xf]
    %v413 = vld [vmem:[#allocation10 + $0x10] sm:$0xf]
    %v414 = vld [vmem:[#allocation10 + $0x14] sm:$0xf]
    %v415 = vld [vmem:[#allocation10 + $0x18] sm:$0xf]
    %v416 = vld [vmem:[#allocation10 + $0x1c] sm:$0xf]
    %v417 = vld [vmem:[#allocation10 + $0x20] sm:$0xf]
    %v418 = vld [vmem:[#allocation10 + $0x24] sm:$0xf]
    %v419 = vld [vmem:[#allocation10 + $0x28] sm:$0xf]
    %v420 = vld [vmem:[#allocation10 + $0x2c] sm:$0xf]
    %v421 = vld [vmem:[#allocation10 + $0x30] sm:$0xf]
    %v422 = vld [vmem:[#allocation10 + $0x34] sm:$0xf]
    %v423 = vld [vmem:[#allocation10 + $0x38] sm:$0xf]
    %v424 = vld [vmem:[#allocation10 + $0x3c] sm:$0xf]
    %v425 = vld [vmem:[#allocation10 + $0x40] sm:$0xf]
    %v426 = vld [vmem:[#allocation10 + $0x44] sm:$0xf]
    %v427 = vld [vmem:[#allocation10 + $0x48] sm:$0xf]
    %v428 = vld [vmem:[#allocation10 + $0x4c] sm:$0xf]
    %v429 = vld [vmem:[#allocation10 + $0x50] sm:$0xf]
    %v430 = vld [vmem:[#allocation10 + $0x54] sm:$0xf]
    %v431 = vld [vmem:[#allocation10 + $0x58] sm:$0xf]
    %v432 = vld [vmem:[#allocation10 + $0x5c] sm:$0xf]
    %v433 = vld [vmem:[#allocation10 + $0x60] sm:$0xf]
    %v434 = vld [vmem:[#allocation10 + $0x64] sm:$0xf]
    %v435 = vld [vmem:[#allocation10 + $0x68] sm:$0xf]
    %v436 = vld [vmem:[#allocation10 + $0x6c] sm:$0xf]
    %v437 = vld [vmem:[#allocation10 + $0x70] sm:$0xf]
    %v438 = vld [vmem:[#allocation10 + $0x74] sm:$0xf]
    %v439 = vld [vmem:[#allocation10 + $0x78] sm:$0xf]
    %v440 = vld [vmem:[#allocation10 + $0x7c] sm:$0xf]
    %v441 = vld [vmem:[%s6] sm:$0x1]
    %v443 = vperm.slane %v441, 0
    %v477 = vunpack.c.l.b16 %v409
    %v478 = vunpack.c.l.b16 %v410
    %v479 = vunpack.c.l.b16 %v411
    %v480 = vunpack.c.l.b16 %v412
    %v481 = vunpack.c.l.b16 %v413
    %v482 = vunpack.c.l.b16 %v414
    %v483 = vunpack.c.l.b16 %v415
    %v484 = vunpack.c.l.b16 %v416
    %v485 = vunpack.c.l.b16 %v417
    %v486 = vunpack.c.l.b16 %v418
    %v487 = vunpack.c.l.b16 %v419
    %v488 = vunpack.c.l.b16 %v420
    %v489 = vunpack.c.l.b16 %v421
    %v490 = vunpack.c.l.b16 %v422
    %v491 = vunpack.c.l.b16 %v423
    %v492 = vunpack.c.l.b16 %v424
    %v493 = vunpack.c.l.b16 %v425
    %v494 = vunpack.c.l.b16 %v426
    %v495 = vunpack.c.l.b16 %v427
    %v496 = vunpack.c.l.b16 %v428
    %v497 = vunpack.c.l.b16 %v429
    %v498 = vunpack.c.l.b16 %v430
    %v499 = vunpack.c.l.b16 %v431
    %v500 = vunpack.c.l.b16 %v432
    %v501 = vunpack.c.l.b16 %v433
    %v502 = vunpack.c.l.b16 %v434
    %v503 = vunpack.c.l.b16 %v435
    %v504 = vunpack.c.l.b16 %v436
    %v505 = vunpack.c.l.b16 %v437
    %v506 = vunpack.c.l.b16 %v438
    %v507 = vunpack.c.l.b16 %v439
    %v508 = vunpack.c.l.b16 %v440
    %v509 = vpack.c.b16 %v478, %v477
    %v510 = vpack.c.b16 %v480, %v479
    %v511 = vpack.c.b16 %v482, %v481
    %v512 = vpack.c.b16 %v484, %v483
    %v513 = vpack.c.b16 %v486, %v485
    %v514 = vpack.c.b16 %v488, %v487
    %v515 = vpack.c.b16 %v490, %v489
    %v516 = vpack.c.b16 %v492, %v491
    %v517 = vpack.c.b16 %v494, %v493
    %v518 = vpack.c.b16 %v496, %v495
    %v519 = vpack.c.b16 %v498, %v497
    %v520 = vpack.c.b16 %v500, %v499
    %v521 = vpack.c.b16 %v502, %v501
    %v522 = vpack.c.b16 %v504, %v503
    %v523 = vpack.c.b16 %v506, %v505
    %v524 = vpack.c.b16 %v508, %v507
    %541 = vmatpush.bf16.msra.mxu0 %v516
    %542 = vmatpush.bf16.msra.mxu0 %v515
    %543 = vmatpush.bf16.msra.mxu0 %v514
    %544 = vmatpush.bf16.msra.mxu0 %v513
    %545 = vmatpush.bf16.msra.mxu0 %v512
    %546 = vmatpush.bf16.msra.mxu0 %v511
    %547 = vmatpush.bf16.msra.mxu0 %v510
    %548 = vmatpush.bf16.msra.mxu0 %v509
    %549 = vmatmul.bf16.gmra.mxu0 %v407
    %v550 = vpop.f32.mrf.mxu0
    %v551 = vadd.f32 %v443, %v550
    %v552 = vpop.f32.mrf.mxu0
    %553 = vdwg.mxu0
    %554 = vmatpush.bf16.msra.mxu0 %v524
    %555 = vmatpush.bf16.msra.mxu0 %v523
    %556 = vmatpush.bf16.msra.mxu0 %v522
    %557 = vmatpush.bf16.msra.mxu0 %v521
    %558 = vmatpush.bf16.msra.mxu0 %v520
    %559 = vmatpush.bf16.msra.mxu0 %v519
    %560 = vmatpush.bf16.msra.mxu0 %v518
    %561 = vmatpush.bf16.msra.mxu0 %v517
    %562 = vmatmul.bf16.gmra.mxu0 %v408
    %v563 = vpop.f32.mrf.mxu0
    %v564 = vadd.f32 %v551, %v563
    %v565 = vpop.f32.mrf.mxu0
    %566 = vdwg.mxu0
    %v567 = vtanh.pop %v564
    %v568 = vmul.f32 %v567, 2.0
    %v569 = vpack.c.bf16 %v568, %v568
    %570 = vst [vmem:[#allocation11] sm:$0xf] %v569
    // Predicated region
    $region50: #{tpu_custom_call.1} parent=1 // pred_check
      _
    $region51: #{tpu_custom_call.1} parent=1 // pred_check_branch
      %572 = sbr.rel (0) target = $region53
    $region52: #{tpu_custom_call.1} parent=1 // pred_region
      %574 = vsyncadd [#allocation4], 0
      %s576 = sshll.u32 [#allocation11], 4
      %s577 = int_to_ptr.vmem [resolvable:$true] %s576
      %s578 = sshll.u32 %s7, 4
      %s579 = int_to_ptr.hbm [resolvable:$true] %s578
      %581 = dma.vmem_to_hbm [thread:$0]  %s577, 64, %s579, [#allocation4]
    $region53: #{tpu_custom_call.1} parent=1 // pred_fallthru
      _
    // Predicated region
    $region54: #{tpu_custom_call.1} parent=1 // pred_check
      _
    $region55: #{tpu_custom_call.1} parent=1 // pred_check_branch
      %583 = sbr.rel (0) target = $region57
    $region56: #{tpu_custom_call.1} parent=1 // pred_region
      %585 = dma.done [#allocation4], 64
    $region57: #{tpu_custom_call.1} parent=1 // pred_fallthru
      _
    %586 = vsyncpa [#allocation3], 1
    %587 = vsyncpa [#allocation6], 1
    %588 = vsyncpa [#allocation9], 1
    %589 = vsyncpa [#allocation4], 1

</llo_original>
